<compile_context>
chip_gen: v7x
topology: tpu7x:2x2x1
jax: 0.10.0
libtpu: 0.0.40
codegen_flags: <defaults>
</compile_context>

<pallas_src>
import functools

import jax
import jax.numpy as jnp
from jax.experimental import pallas as pl
from jax.experimental.pallas import tpu as pltpu


def _cdiv(a, b):
    return -(-a // b)


def _round_up(x, m):
    return ((x + m - 1) // m) * m


def _vmem_limit_bytes():
    """Generation-aware VMEM limit: ~3/4 of physical capacity
    (v7x: 64 MiB -> 48 MiB; v5e/v6e: 128 MiB -> 96 MiB)."""
    try:
        cap = pltpu.get_tpu_info().vmem_capacity_bytes
    except Exception:
        cap = 64 * 1024 * 1024            # conservative fallback (v7x physical)
    return max(32 * 1024 * 1024, (3 * cap) // 4)


def _choose_row_tile(n):
    """Row-strip height: multiple of 128 for n > 128 (keeps the MXU M dim full,
    v5e especially), and >= 2 strips whenever legal so both v7x TensorCores
    get work under dimension_semantics=('parallel', ...)."""
    if n < 16:
        return n                           # single strip; block == full dim is legal
    if n <= 128:
        return min(n, _round_up(_cdiv(n, 2), 8))
    return min(256, _round_up(_cdiv(n, 2), 128))


def _choose_col_tile(n, tm, hp, vmem_limit):
    """Column-strip width for stage 2: largest multiple of 128 whose
    double-buffered streaming working set fits in ~half the VMEM limit."""
    if n <= 128:
        return n
    tn = min(2048, 128 * (n // 128))
    budget = vmem_limit // 2
    while tn > 128:
        footprint = (
            2 * (2 * tm * tn * 4)          # adjacency in + R out, double-buffered f32
            + 2 * tn * hp * 2              # x_col strip, double-buffered bf16
            + 2 * tm * hp * 2              # x_row strip
            + 3 * tm * tn * 4              # in-kernel f32 temporaries
        )
        if footprint <= budget:
            break
        tn -= 128
    return tn
    # TODO(synk): sweep pipeline_mode=pl.Buffered(3) on the adjacency in_spec
    # (with the extra buffer added to `footprint`) once HBM-bound on real shapes.


def _fast_reciprocal(x):
    # EUP approximate reciprocal + one Newton step (only on tiny [tm, 1] vectors).
    r = pl.reciprocal(x, approx=True)
    return r * (2.0 - x * r)


def _mlp_standardize_kernel(feat_ref, w_ref, b_ref, hq_ref, x_ref, *, h_valid):
    """hq = sigmoid(feat @ W + b), stored at its narrow (tm, h) width;
    X = (hq - mean) / (std + 1e-8) with unbiased std, stored as bf16."""
    feat = feat_ref[...]                                            # [tm, D]  f32
    z = jnp.dot(feat, w_ref[...], preferred_element_type=jnp.float32) + b_ref[...]
    hq = jax.nn.sigmoid(z)                                          # [tm, Hp] f32

    # Only the first h_valid hidden columns are real; the rest are lane padding.
    col = jax.lax.broadcasted_iota(jnp.int32, hq.shape, 1)
    valid = col < h_valid
    hq_m = jnp.where(valid, hq, 0.0)

    hq_ref[...] = hq_m[:, :h_valid]                                 # narrow direct store

    mean = jnp.sum(hq_m, axis=1, keepdims=True) * (1.0 / h_valid)
    centered = jnp.where(valid, hq - mean, 0.0)
    ddof = max(h_valid - 1, 1)                                      # guard h_valid == 1
    var = jnp.sum(centered * centered, axis=1, keepdims=True) * (1.0 / ddof)
    inv_std = _fast_reciprocal(jnp.sqrt(var) + 1e-8)
    # bf16 store -> stage 2 MXU operands; padded columns stay exactly 0.
    x_ref[...] = (centered * inv_std).astype(jnp.bfloat16)


def _attention_kernel(x_row_ref, x_col_ref, adj_ref, inv_l1_ref, r_ref, *, alpha):
    """R[i-strip, j-strip] = (X_i @ X_j^T)^2 * inv_l1_i + alpha * SE[i, j].
    bf16 x bf16 MXU matmul, f32 accumulation; inv_l1 is precomputed (Gram trick)."""
    inter = jax.lax.dot_general(
        x_row_ref[...], x_col_ref[...],
        dimension_numbers=(((1,), (1,)), ((), ())),                 # trans-B, no XLU transpose
        preferred_element_type=jnp.float32)                         # [tm, tn]
    inter = inter * inter                                           # >= 0, no abs() needed
    r_ref[...] = inter * inv_l1_ref[...] + alpha * adj_ref[...]


def comattion_forward(adjacency, feature, weight, bias, alpha):
    n, d = feature.shape
    h = weight.shape[1]
    hp = _round_up(h, 128)                                          # lane-dense hidden dim

    feature = feature.astype(jnp.float32)
    adjacency = adjacency.astype(jnp.float32)
    w_p = jnp.pad(weight.astype(jnp.float32), ((0, 0), (0, hp - h)))
    b_p = jnp.pad(jnp.asarray(bias, jnp.float32).reshape(1, -1), ((0, 0), (0, hp - h)))

    vmem_limit = _vmem_limit_bytes()
    tm = _choose_row_tile(n)
    tn = _choose_col_tile(n, tm, hp, vmem_limit)

    # ---- stage 1: MLP + sigmoid + row standardization (O(N*D*H)) ----
    mlp_kernel = functools.partial(_mlp_standardize_kernel, h_valid=h)
    hq, x_std = pl.pallas_call(
        mlp_kernel,
        out_shape=(jax.ShapeDtypeStruct((n, h), jnp.float32),       # hq, narrow
                   jax.ShapeDtypeStruct((n, hp), jnp.bfloat16)),    # standardized X
        grid=(_cdiv(n, tm),),
        in_specs=[
            pl.BlockSpec((tm, d), lambda i: (i, 0)),                # feature row strip
            pl.BlockSpec((d, hp), lambda i: (0, 0)),                # full weight (fetched once)
            pl.BlockSpec((1, hp), lambda i: (0, 0)),                # full bias
        ],
        out_specs=(
            pl.BlockSpec((tm, h), lambda i: (i, 0)),
            pl.BlockSpec((tm, hp), lambda i: (i, 0)),
        ),
        compiler_params=pltpu.CompilerParams(
            dimension_semantics=("parallel",),
            vmem_limit_bytes=vmem_limit),
    )(feature, w_p, b_p)

    # ---- Gram-trick pre-pass (tiny, O(N*H^2), plain JAX): exact per-row L1 of
    # the squared intersection, so stage 2 needs no full-X residency and no
    # reduction grid axis.  l1_i = x_i^T (X^T X) x_i = sum_j (x_i . x_j)^2.
    xf = x_std.astype(jnp.float32)                                  # bf16 -> f32, lossless
    gram = jnp.dot(xf.T, xf, precision=jax.lax.Precision.HIGHEST)   # [Hp, Hp]
    xg = jnp.dot(xf, gram, precision=jax.lax.Precision.HIGHEST)     # [N, Hp]
    l1 = jnp.sum(xg * xf, axis=1, keepdims=True)                    # [N, 1]
    inv_l1 = 1.0 / jnp.maximum(l1, 1e-12)                           # F.normalize eps

    # ---- stage 2: 2-D tiled attention over the N x N part (O(N^2*H)) ----
    att_kernel = functools.partial(_attention_kernel, alpha=float(alpha))
    r = pl.pallas_call(
        att_kernel,
        out_shape=jax.ShapeDtypeStruct((n, n), jnp.float32),
        grid=(_cdiv(n, tm), _cdiv(n, tn)),
        in_specs=[
            pl.BlockSpec((tm, hp), lambda i, j: (i, 0)),            # X row strip (bf16)
            pl.BlockSpec((tn, hp), lambda i, j: (j, 0)),            # X col strip (bf16)
            pl.BlockSpec((tm, tn), lambda i, j: (i, j)),            # adjacency tile (f32)
            pl.BlockSpec((tm, 1), lambda i, j: (i, 0)),             # per-row 1/L1
        ],
        out_specs=pl.BlockSpec((tm, tn), lambda i, j: (i, j)),      # R tile, written once
        compiler_params=pltpu.CompilerParams(
            dimension_semantics=("parallel", "arbitrary"),
            vmem_limit_bytes=vmem_limit),
    )(x_std, x_std, adjacency, inv_l1)

    return hq, r


def init_params(key, input_dim, output_dim):
    kw, kb = jax.random.split(key)
    # xavier_normal_ with gain=1: std = sqrt(2 / (fan_in + fan_out))
    std_w = (2.0 / (input_dim + output_dim)) ** 0.5
    weight = std_w * jax.random.normal(kw, (input_dim, output_dim), jnp.float32)
    bias = 0.01 * jax.random.normal(kb, (1, output_dim), jnp.float32)
    return weight, bias


if __name__ == "__main__":
    key = jax.random.PRNGKey(0)
    k_feat, k_adj, k_param, k_feat2, k_adj2, k_param2 = jax.random.split(key, 6)

    def reference(adjacency, feature, weight, bias, alpha, h):
        # Pure-JAX reference of the torch math (torch.std is unbiased, ddof=1).
        z = feature @ weight + bias
        hq = jax.nn.sigmoid(z)
        mean = hq.mean(axis=1, keepdims=True)
        std = jnp.sqrt(((hq - mean) ** 2).sum(axis=1, keepdims=True) / (h - 1))
        x = (hq - mean) / (std + 1e-8)
        inter = (x @ x.T) ** 2
        att = inter / jnp.maximum(jnp.abs(inter).sum(axis=1, keepdims=True), 1e-12)
        return hq, att + alpha * adjacency

    # --- primary small shape ---
    N, INPUT_DIM, OUTPUT_DIM, ALPHA = 8, 32, 16, 0.5
    feature = jax.random.normal(k_feat, (N, INPUT_DIM), jnp.float32)
    adjacency = jax.random.uniform(k_adj, (N, N), jnp.float32)
    weight, bias = init_params(k_param, INPUT_DIM, OUTPUT_DIM)

    hq, R = comattion_forward(adjacency, feature, weight, bias, ALPHA)
    jax.block_until_ready((hq, R))

    hq_ref, R_ref = reference(adjacency, feature, weight, bias, ALPHA, OUTPUT_DIM)
    assert hq.shape == (N, OUTPUT_DIM) and R.shape == (N, N)
    assert jnp.allclose(hq, hq_ref, atol=1e-5), "hq mismatch"
    # Stage-2 matmul runs in bf16 (f32 accumulation): compare loosely against the
    # all-f32 reference, and check the exact row-normalization invariant.
    assert jnp.allclose(R, R_ref, atol=1e-2), "R mismatch (bf16 tolerance)"
    att_rowsum = jnp.sum(R - ALPHA * adjacency, axis=1)
    assert jnp.allclose(att_rowsum, 1.0, atol=1e-3), "attention rows not L1-normalized"

    # --- odd-sized shape to exercise multi-block / partial-tile paths ---
    N2, D2, H2, ALPHA2 = 300, 24, 20, 0.3
    feature2 = jax.random.normal(k_feat2, (N2, D2), jnp.float32)
    adjacency2 = jax.random.uniform(k_adj2, (N2, N2), jnp.float32)
    weight2, bias2 = init_params(k_param2, D2, H2)

    hq2, R2 = comattion_forward(adjacency2, feature2, weight2, bias2, ALPHA2)
    jax.block_until_ready((hq2, R2))
    hq2_ref, R2_ref = reference(adjacency2, feature2, weight2, bias2, ALPHA2, H2)
    assert jnp.allclose(hq2, hq2_ref, atol=1e-5), "hq mismatch (odd shape)"
    assert jnp.allclose(R2, R2_ref, atol=1e-2), "R mismatch (odd shape)"
    att2_rowsum = jnp.sum(R2 - ALPHA2 * adjacency2, axis=1)
    assert jnp.allclose(att2_rowsum, 1.0, atol=1e-3), "rows not normalized (odd shape)"

    print("KERNEL_OK")
</pallas_src>

<mosaic_0001>
module attributes {stable_mosaic.version = 11 : i64} {
  func.func @_mlp_standardize_kernel(%arg0: i32, %arg1: memref<8x32xf32, #tpu.memory_space<vmem>>, %arg2: memref<32x128xf32, #tpu.memory_space<vmem>>, %arg3: memref<1x128xf32, #tpu.memory_space<vmem>>, %arg4: memref<8x16xf32, #tpu.memory_space<vmem>>, %arg5: memref<8x128xbf16, #tpu.memory_space<vmem>>) attributes {dimension_semantics = [#tpu.dimension_semantics<parallel>], iteration_bounds = array<i64: 1>, scalar_prefetch = 0 : i64, scratch_operands = 0 : i64, tpu.core_type = #tpu.core_type<tc>, window_params = [{transform_indices = @transform_0, window_bounds = array<i64: 8, 32>}, {pipeline_mode = #tpu.pipeline_mode<synchronous>, transform_indices = @transform_1, window_bounds = array<i64: 32, 128>}, {pipeline_mode = #tpu.pipeline_mode<synchronous>, transform_indices = @transform_2, window_bounds = array<i64: 1, 128>}, {transform_indices = @transform_3, window_bounds = array<i64: 8, 16>}, {transform_indices = @transform_4, window_bounds = array<i64: 8, 128>}]} {
    %c0 = arith.constant 0 : index
    %c0_0 = arith.constant 0 : index
    %0 = vector.load %arg1[%c0, %c0_0] : memref<8x32xf32, #tpu.memory_space<vmem>>, vector<8x32xf32>
    %c0_1 = arith.constant 0 : index
    %c0_2 = arith.constant 0 : index
    %1 = vector.load %arg2[%c0_1, %c0_2] : memref<32x128xf32, #tpu.memory_space<vmem>>, vector<32x128xf32>
    %cst = arith.constant dense<0.000000e+00> : vector<8x128xf32>
    %2 = tpu.matmul %0, %1, %cst {dimension_numbers = #tpu.dot_dimension_numbers<[1], [0], [0], [1], [0, 0, 1, 1], [], []>} : vector<8x32xf32>, vector<32x128xf32>, vector<8x128xf32> -> vector<8x128xf32>
    %c0_3 = arith.constant 0 : index
    %c0_4 = arith.constant 0 : index
    %3 = vector.load %arg3[%c0_3, %c0_4] : memref<1x128xf32, #tpu.memory_space<vmem>>, vector<1x128xf32>
    %4 = vector.broadcast %3 : vector<1x128xf32> to vector<8x128xf32>
    %5 = arith.addf %2, %4 : vector<8x128xf32>
    %6 = arith.negf %5 : vector<8x128xf32>
    %7 = math.exp %6 : vector<8x128xf32>
    %cst_5 = arith.constant 1.000000e+00 : f32
    %8 = vector.broadcast %cst_5 : f32 to vector<8x128xf32>
    %9 = arith.addf %8, %7 : vector<8x128xf32>
    %10 = arith.divf %8, %9 : vector<8x128xf32>
    %11 = tpu.iota {dimensions = array<i32: 1>} : vector<8x128xi32>
    %c16_i32 = arith.constant 16 : i32
    %12 = vector.broadcast %c16_i32 : i32 to vector<8x128xi32>
    %13 = arith.cmpi slt, %11, %12 : vector<8x128xi32>
    %cst_6 = arith.constant 0.000000e+00 : f32
    %14 = vector.broadcast %cst_6 : f32 to vector<8x128xf32>
    %15 = arith.select %13, %10, %14 : vector<8x128xi1>, vector<8x128xf32>
    %16 = vector.extract_strided_slice %15 {offsets = [0, 0], sizes = [8, 16], strides = [1, 1]} : vector<8x128xf32> to vector<8x16xf32>
    %c0_7 = arith.constant 0 : index
    %c0_8 = arith.constant 0 : index
    %17 = vector.load %arg4[%c0_7, %c0_8] : memref<8x16xf32, #tpu.memory_space<vmem>>, vector<8x16xf32>
    tpu.vector_store %arg4[%c0_7, %c0_8], %16 {strides = array<i32>} : memref<8x16xf32, #tpu.memory_space<vmem>>, vector<8x16xf32>,
    %cst_9 = arith.constant dense<0.000000e+00> : vector<8xf32>
    %18 = vector.multi_reduction <add>, %15, %cst_9 [1] : vector<8x128xf32> to vector<8xf32>
    %19 = vector.shape_cast %18 : vector<8xf32> to vector<8x1xf32>
    %cst_10 = arith.constant 6.250000e-02 : f32
    %20 = vector.broadcast %cst_10 : f32 to vector<8x1xf32>
    %21 = arith.mulf %19, %20 : vector<8x1xf32>
    %22 = vector.broadcast %21 : vector<8x1xf32> to vector<8x128xf32>
    %23 = arith.subf %10, %22 : vector<8x128xf32>
    %cst_11 = arith.constant 0.000000e+00 : f32
    %24 = vector.broadcast %cst_11 : f32 to vector<8x128xf32>
    %25 = arith.select %13, %23, %24 : vector<8x128xi1>, vector<8x128xf32>
    %26 = arith.mulf %25, %25 : vector<8x128xf32>
    %cst_12 = arith.constant dense<0.000000e+00> : vector<8xf32>
    %27 = vector.multi_reduction <add>, %26, %cst_12 [1] : vector<8x128xf32> to vector<8xf32>
    %28 = vector.shape_cast %27 : vector<8xf32> to vector<8x1xf32>
    %cst_13 = arith.constant 0.0666666701 : f32
    %29 = vector.broadcast %cst_13 : f32 to vector<8x1xf32>
    %30 = arith.mulf %28, %29 : vector<8x1xf32>
    %31 = math.sqrt %30 : vector<8x1xf32>
    %cst_14 = arith.constant 9.99999993E-9 : f32
    %32 = vector.broadcast %cst_14 : f32 to vector<8x1xf32>
    %33 = arith.addf %31, %32 : vector<8x1xf32>
    %34 = tpu.reciprocal %33 {approx = true} : vector<8x1xf32> -> vector<8x1xf32>
    %35 = arith.mulf %33, %34 : vector<8x1xf32>
    %cst_15 = arith.constant 2.000000e+00 : f32
    %36 = vector.broadcast %cst_15 : f32 to vector<8x1xf32>
    %37 = arith.subf %36, %35 : vector<8x1xf32>
    %38 = arith.mulf %34, %37 : vector<8x1xf32>
    %39 = vector.broadcast %38 : vector<8x1xf32> to vector<8x128xf32>
    %40 = arith.mulf %25, %39 : vector<8x128xf32>
    %41 = arith.truncf %40 : vector<8x128xf32> to vector<8x128xbf16>
    %c0_16 = arith.constant 0 : index
    %c0_17 = arith.constant 0 : index
    %42 = vector.load %arg5[%c0_16, %c0_17] : memref<8x128xbf16, #tpu.memory_space<vmem>>, vector<8x128xbf16>
    tpu.vector_store %arg5[%c0_16, %c0_17], %41 {strides = array<i32>} : memref<8x128xbf16, #tpu.memory_space<vmem>>, vector<8x128xbf16>,
    return
  }
  func.func @transform_0(%arg0: i32) -> (i32, i32) {
    %c0_i32 = arith.constant 0 : i32
    %c0_i32_0 = arith.constant 0 : i32
    return %arg0, %c0_i32 : i32, i32
  }
  func.func @transform_1(%arg0: i32) -> (i32, i32) {
    %c0_i32 = arith.constant 0 : i32
    %c0_i32_0 = arith.constant 0 : i32
    %c0_i32_1 = arith.constant 0 : i32
    return %c0_i32, %c0_i32_0 : i32, i32
  }
  func.func @transform_2(%arg0: i32) -> (i32, i32) {
    %c0_i32 = arith.constant 0 : i32
    %c0_i32_0 = arith.constant 0 : i32
    %c0_i32_1 = arith.constant 0 : i32
    return %c0_i32, %c0_i32_0 : i32, i32
  }
  func.func @transform_3(%arg0: i32) -> (i32, i32) {
    %c0_i32 = arith.constant 0 : i32
    %c0_i32_0 = arith.constant 0 : i32
    return %arg0, %c0_i32 : i32, i32
  }
  func.func @transform_4(%arg0: i32) -> (i32, i32) {
    %c0_i32 = arith.constant 0 : i32
    %c0_i32_0 = arith.constant 0 : i32
    return %arg0, %c0_i32 : i32, i32
  }
}

</mosaic_0001>

<llo_original>
// kernel: tpu_custom_call.1
$region0: #{tpu_custom_call.1}
  #allocation0 [shape = 'u32[]', space=smem, size = 0x4, offset = 0x4, fixed_abs, tag = 'smem constant byte address 0x4 - core index']
  #allocation1 [shape = 'u32[144,128]{1,0:T(1,128)}', space=vmem, size = 0x12000, scoped, tag = 'internal scratch']
  %s0 = inlined_call_operand.hbm [shape: f32[8,32], index: 0, kind: input, shape index: {}]
  %s1 = inlined_call_operand.hbm [shape: f32[32,128], index: 1, kind: input, shape index: {}]
  %s2 = inlined_call_operand.vmem [shape: f32[1,128], index: 2, kind: input, shape index: {}]
  %s3 = inlined_call_operand.hbm [shape: f32[8,16], index: 3, kind: output, shape index: {0}]
  %s4 = inlined_call_operand.hbm [shape: bf16[8,128], index: 4, kind: output, shape index: {1}]
  %5 = xla_tuple %s3, %s4
  %s6 = sld [smem:[#allocation0]]
  $region38: #{tpu_custom_call.1} parent=0
    _
  %s8 = ssub.s32 1, %s6
  %s9 = scalar_select 0, %s8, %s6
  $region1: #{tpu_custom_call.1} parent=0
    #allocation2 [shape = 'u8[4096]{0}', space=vmem, size = 0x1000, scoped, tag = 'input window, operand 0, single buffered']
    #allocation3 [shape = 's32[1]{0}', space=sflag, size = 0x4, scoped, tag = 'scoped memory for tpu_custom_call.1']
    #allocation4 [shape = 's32[1]{0}', space=sflag, size = 0x4, scoped, tag = 'scoped memory for tpu_custom_call.1']
    #allocation5 [shape = 'u8[16384]{0}', space=vmem, size = 0x4000, scoped, tag = 'input window, operand 1, single buffered']
    #allocation6 [shape = 's32[1]{0}', space=sflag, size = 0x4, scoped, tag = 'scoped memory for tpu_custom_call.1']
    #allocation7 [shape = 'u8[4096]{0}', space=vmem, size = 0x1000, scoped, tag = 'output window, operand 0, single buffered']
    #allocation8 [shape = 'u8[2048]{0}', space=vmem, size = 0x800, scoped, tag = 'output window, operand 1, single buffered']
    #allocation9 [shape = 's32[1]{0}', space=sflag, size = 0x4, scoped, tag = 'scoped memory for tpu_custom_call.1']
    %10 = vsyncpa [#allocation3], 0
    %11 = vsyncpa [#allocation6], 0
    %12 = vsyncpa [#allocation4], 0
    %13 = vsyncpa [#allocation9], 0
    // Predicated region
    $region2: #{tpu_custom_call.1} parent=1 // pred_check
      _
    $region3: #{tpu_custom_call.1} parent=1 // pred_check_branch
      %15 = sbr.rel (0) target = $region5
    $region4: #{tpu_custom_call.1} parent=1 // pred_region
      %s17 = ssub.s32 128, 128
      %18 = vsyncadd [#allocation3], %s17
      %s20 = sshll.u32 [#allocation2], 4
      %s21 = int_to_ptr.vmem [resolvable:$true] %s20
      %23 = dma.hbm_to_vmem [thread:$0]  %s0, 128, %s21, [#allocation3]
    $region5: #{tpu_custom_call.1} parent=1 // pred_fallthru
      _
    // Predicated region
    $region6: #{tpu_custom_call.1} parent=1 // pred_check
      _
    $region7: #{tpu_custom_call.1} parent=1 // pred_check_branch
      %25 = sbr.rel (0) target = $region9
    $region8: #{tpu_custom_call.1} parent=1 // pred_region
      %s27 = ssub.s32 512, 512
      %28 = vsyncadd [#allocation6], %s27
      %s29 = sshll.u32 [#allocation5], 4
      %s30 = int_to_ptr.vmem [resolvable:$true] %s29
      %35 = dma.hbm_to_vmem [thread:$0]  %s1, 512, %s30, [#allocation6], 128, 128, 8
    $region9: #{tpu_custom_call.1} parent=1 // pred_fallthru
      _
    // Predicated region
    $region10: #{tpu_custom_call.1} parent=1 // pred_check
      _
    $region11: #{tpu_custom_call.1} parent=1 // pred_check_branch
      %37 = sbr.rel (0) target = $region13
    $region12: #{tpu_custom_call.1} parent=1 // pred_region
      _
    $region13: #{tpu_custom_call.1} parent=1 // pred_fallthru
      _
    // Predicated region
    $region14: #{tpu_custom_call.1} parent=1 // pred_check
      _
    $region15: #{tpu_custom_call.1} parent=1 // pred_check_branch
      %39 = sbr.rel (0) target = $region17
    $region16: #{tpu_custom_call.1} parent=1 // pred_region
      %40 = dma.done [#allocation3], 128
    $region17: #{tpu_custom_call.1} parent=1 // pred_fallthru
      _
    // Predicated region
    $region18: #{tpu_custom_call.1} parent=1 // pred_check
      _
    $region19: #{tpu_custom_call.1} parent=1 // pred_check_branch
      %42 = sbr.rel (0) target = $region21
    $region20: #{tpu_custom_call.1} parent=1 // pred_region
      %43 = dma.done [#allocation6], 512
    $region21: #{tpu_custom_call.1} parent=1 // pred_fallthru
      _
    %v44 = vld [vmem:[#allocation2] sm:$0xff]
    %v45 = vld [vmem:[#allocation5] sm:$0xff]
    %v46 = vld [vmem:[#allocation5 + $0x8] sm:$0xff]
    %v47 = vld [vmem:[#allocation5 + $0x10] sm:$0xff]
    %v48 = vld [vmem:[#allocation5 + $0x18] sm:$0xff]
    %v49 = vld [vmem:[%s2] sm:$0x1]
    %v51 = vlaneseq
    %v52 = vshrl.u32 %v51, 7
    %v53 = vsub.s32 0, %v52
    %v54 = vrot.slane %v49, %v53
    %vm56 = vcmask 261120
    %v58 = vsel %vm56, %v44, 0
    %60 = vmatprep.subr.mxu0 0.0
    %61 = vmatpush1.msra.mxu0 %v45
    %62 = vmatprep.subr.mxu0 0.0
    %63 = vmatpush1.msra.mxu0 %v46
    %64 = vmatprep.subr.mxu0 0.0
    %65 = vmatpush1.msra.mxu0 %v47
    %66 = vmatprep.subr.mxu0 0.0
    %67 = vmatpush1.msra.mxu0 %v48
    %68 = vmatprep.subr.mxu0 0.0
    %69 = vmatpush1.msra.mxu0 0.0
    %70 = vmatprep.subr.mxu0 0.0
    %71 = vmatpush1.msra.mxu0 0.0
    %72 = vmatprep.subr.mxu0 0.0
    %73 = vmatpush1.msra.mxu0 0.0
    %74 = vmatprep.subr.mxu0 0.0
    %75 = vmatpush1.msra.mxu0 0.0
    %76 = vmatprep.subr.mxu0 0.0
    %77 = vmatpush1.msra.mxu0 0.0
    %78 = vmatprep.subr.mxu0 0.0
    %79 = vmatpush1.msra.mxu0 0.0
    %80 = vmatprep.subr.mxu0 0.0
    %81 = vmatpush1.msra.mxu0 0.0
    %82 = vmatprep.subr.mxu0 0.0
    %83 = vmatpush1.msra.mxu0 0.0
    %84 = vmatprep.subr.mxu0 0.0
    %85 = vmatpush1.msra.mxu0 0.0
    %86 = vmatprep.subr.mxu0 0.0
    %87 = vmatpush1.msra.mxu0 0.0
    %88 = vmatprep.subr.mxu0 0.0
    %89 = vmatpush1.msra.mxu0 0.0
    %90 = vmatprep.subr.mxu0 0.0
    %91 = vmatpush1.msra.mxu0 0.0
    %92 = vmatprep.subr.mxu0 0.0
    %93 = vmatpush1.msra.mxu0 0.0
    %94 = vmatprep.subr.mxu0 0.0
    %95 = vmatpush1.msra.mxu0 0.0
    %96 = vmatprep.subr.mxu0 0.0
    %97 = vmatpush1.msra.mxu0 0.0
    %98 = vmatprep.subr.mxu0 0.0
    %99 = vmatpush1.msra.mxu0 0.0
    %100 = vmatprep.subr.mxu0 0.0
    %101 = vmatpush1.msra.mxu0 0.0
    %102 = vmatprep.subr.mxu0 0.0
    %103 = vmatpush1.msra.mxu0 0.0
    %104 = vmatprep.subr.mxu0 0.0
    %105 = vmatpush1.msra.mxu0 0.0
    %106 = vmatprep.subr.mxu0 0.0
    %107 = vmatpush1.msra.mxu0 0.0
    %108 = vmatprep.subr.mxu0 0.0
    %109 = vmatpush1.msra.mxu0 0.0
    %110 = vmatprep.subr.mxu0 0.0
    %111 = vmatpush1.msra.mxu0 0.0
    %112 = vmatprep.subr.mxu0 0.0
    %113 = vmatpush1.msra.mxu0 0.0
    %114 = vmatprep.subr.mxu0 0.0
    %115 = vmatpush1.msra.mxu0 0.0
    %116 = vmatprep.subr.mxu0 0.0
    %117 = vmatpush1.msra.mxu0 0.0
    %118 = vmatprep.subr.mxu0 0.0
    %119 = vmatpush1.msra.mxu0 0.0
    %120 = vmatprep.subr.mxu0 0.0
    %121 = vmatpush1.msra.mxu0 0.0
    %122 = vmatprep.subr.mxu0 0.0
    %123 = vmatpush1.msra.mxu0 0.0
    %124 = vmatprep.mubr.f32.mxu0 0.0
    %125 = vmatmul.mubr.f32.gmra.mrb[0].mxu0 %v58
    %v126 = vpop.f32.mrb[0].mxu0
    %v127 = vadd.f32 %v54, %v126
    %v128 = vpop.f32.mrb[0].mxu0
    %129 = vdwg.mxu0
    %v130 = vxor.u32 %v127, 2147483648
    %v131 = vmul.f32 %v130, 1.442695
    %v132 = vpow.pop %v131
    %v133 = vadd.f32 %v132, 1.0
    %v134 = vrcp.pop %v133
    %v135 = vmul.f32 1.0, %v134
    %v136 = vlaneseq
    %v137 = vand.u32 %v136, 127
    %vm138 = vcmp.lt.s32.totalorder %v137, 16
    %v139 = vsel %vm138, %v135, 0.0
    %vm140 = vcmask 130048
    %141 = vst.msk [vmem:[#allocation7] sm:$0xff] %vm140, %v139
    %142 = vadd.xlane.f32.xlu0 %v139
    %v143 = vpop.xlane.xlu0 %142
    %v144 = vmul.f32 %v143, 0.0625
    %v145 = vsub.f32 %v135, %v144
    %v146 = vsel %vm138, %v145, 0.0
    %v147 = vmul.f32 %v146, %v146
    %148 = vadd.xlane.f32.xlu0 %v147
    %v149 = vpop.xlane.xlu0 %148
    %v150 = vmul.f32 %v149, 0.06666667
    %v151 = vrsqrt.pop %v150
    %v152 = vmul.f32 %v150, %v151
    %vm153 = vcmp.eq.f32.partialorder %v150, inf
    %v154 = vsel %vm153, %v150, %v152
    %vm155 = vcmp.eq.f32.partialorder %v150, 0.0
    %v156 = vand.u32 %v150, 2147483648
    %v157 = vsel %vm155, %v156, %v154
    %v158 = vadd.f32 %v157, 1e-08
    %v159 = vrcp.pop %v158
    %v160 = vmul.f32 %v158, %v159
    %v161 = vsub.f32 2.0, %v160
    %v162 = vmul.f32 %v159, %v161
    %v163 = vmul.f32 %v146, %v162
    %v164 = vpack.c.bf16 %v163, %v163
    %165 = vst [vmem:[#allocation8] sm:$0xf] %v164
    // Predicated region
    $region22: #{tpu_custom_call.1} parent=1 // pred_check
      _
    $region23: #{tpu_custom_call.1} parent=1 // pred_check_branch
      %167 = sbr.rel (0) target = $region25
    $region24: #{tpu_custom_call.1} parent=1 // pred_region
      %s169 = ssub.s32 128, 128
      %170 = vsyncadd [#allocation4], %s169
      %s172 = sshll.u32 [#allocation7], 4
      %s173 = int_to_ptr.vmem [resolvable:$true] %s172
      %175 = dma.vmem_to_hbm [thread:$0]  %s173, 128, %s3, [#allocation4]
    $region25: #{tpu_custom_call.1} parent=1 // pred_fallthru
      _
    // Predicated region
    $region26: #{tpu_custom_call.1} parent=1 // pred_check
      _
    $region27: #{tpu_custom_call.1} parent=1 // pred_check_branch
      %177 = sbr.rel (0) target = $region29
    $region28: #{tpu_custom_call.1} parent=1 // pred_region
      %s179 = ssub.s32 64, 64
      %180 = vsyncadd [#allocation9], %s179
      %s182 = sshll.u32 [#allocation8], 4
      %s183 = int_to_ptr.vmem [resolvable:$true] %s182
      %185 = dma.vmem_to_hbm [thread:$0]  %s183, 64, %s4, [#allocation9]
    $region29: #{tpu_custom_call.1} parent=1 // pred_fallthru
      _
    // Predicated region
    $region30: #{tpu_custom_call.1} parent=1 // pred_check
      _
    $region31: #{tpu_custom_call.1} parent=1 // pred_check_branch
      %187 = sbr.rel (0) target = $region33
    $region32: #{tpu_custom_call.1} parent=1 // pred_region
      %188 = dma.done [#allocation4], 128
    $region33: #{tpu_custom_call.1} parent=1 // pred_fallthru
      _
    // Predicated region
    $region34: #{tpu_custom_call.1} parent=1 // pred_check
      _
    $region35: #{tpu_custom_call.1} parent=1 // pred_check_branch
      %190 = sbr.rel (0) target = $region37
    $region36: #{tpu_custom_call.1} parent=1 // pred_region
      %191 = dma.done [#allocation9], 64
    $region37: #{tpu_custom_call.1} parent=1 // pred_fallthru
      _
    %192 = vsyncpa [#allocation3], 1
    %193 = vsyncpa [#allocation6], 1
    %194 = vsyncpa [#allocation4], 1
    %195 = vsyncpa [#allocation9], 1

</llo_original>
